<compile_context>
chip_gen: v5e
topology: v5e:2x2
jax: 0.10.0
libtpu: 0.0.40
codegen_flags: <defaults>
</compile_context>

<pallas_src>
import functools

import jax
import jax.numpy as jnp
from jax.experimental import pallas as pl
from jax.experimental.pallas import tpu as pltpu

H1 = 256          # shared_fc1 out
H2 = 256          # shared_fc2 out
H3_PAD = 128      # shared_fc3 out (64) padded to a full lane vector
HEAD_W = 128      # fused mu|sigma head width (lane-dense output slab)
HALF = 64         # mu -> lanes [0, HALF), sigma -> lanes [HALF, HEAD_W)


def _round_up(x, m):
    return (x + m - 1) // m * m


def _policy_kernel(x_ref,
                   w1_ref, b1_ref,
                   w2_ref, b2_ref,
                   w3_ref, b3_ref,
                   wh_ref, bh_ref,
                   out_ref, *, act_dtype):
    cdt = w1_ref.dtype  # MXU input dtype (bf16 by default); accum stays f32

    def layer(h, w_ref, b_ref):
        acc = jnp.dot(h.astype(cdt), w_ref[...],
                      preferred_element_type=jnp.float32) + b_ref[...]
        # tanh in act_dtype (bf16 on v6e/v7x => ~2x EUP rate); result feeds the
        # next matmul directly, so no extra cast op on the bf16 path.
        return jnp.tanh(acc.astype(act_dtype))

    h = layer(x_ref[...], w1_ref, b1_ref)     # stateDim -> 256
    h = layer(h, w2_ref, b2_ref)              # 256 -> 256
    h = layer(h, w3_ref, b3_ref)              # 256 -> 128 (64 real + zero pad)

    # Fused mu|sigma head: one lane-dense [TB, 128] result, f32 all the way
    # (exp amplifies error, keep it full precision).
    head = jnp.dot(h.astype(cdt), wh_ref[...],
                   preferred_element_type=jnp.float32) + bh_ref[...]
    lane = jax.lax.broadcasted_iota(jnp.int32, head.shape, 1)
    is_sigma = lane >= HALF
    # Clamp mu lanes to 0 before exp: the discarded branch can never overflow
    # to inf (keeps finite-check tooling happy).
    out = jnp.where(is_sigma, jnp.exp(jnp.where(is_sigma, head, 0.0)), head)
    out_ref[...] = out.astype(out_ref.dtype)


def prepare_params(params, *, weight_dtype=jnp.bfloat16):
    """One-time packing of PolicyNet parameters for the kernel.

    Hoisted out of the per-call path: the ~10 pad/cast ops here would
    otherwise dominate wall time for this ~1 us/tile kernel.  Returns
    (packed_weights_tuple, action_dim)."""
    f32 = jnp.float32
    A = params["wmu"].shape[1]
    assert A <= HALF, "actionDim must be <= 64 for the fused head layout"

    w1 = params["w1"].astype(weight_dtype)                       # (S, 256), K unpadded
    b1 = params["b1"].reshape(1, H1).astype(f32)
    w2 = params["w2"].astype(weight_dtype)                       # (256, 256)
    b2 = params["b2"].reshape(1, H2).astype(f32)
    w3 = jnp.zeros((H2, H3_PAD), f32).at[:, :64].set(params["w3"]).astype(weight_dtype)
    b3 = jnp.zeros((1, H3_PAD), f32).at[:, :64].set(params["b3"].reshape(1, 64))

    # Fused head: mu in cols [0, A), sigma in cols [HALF, HALF+A); zero pad
    # elsewhere (tanh(0)=0 inputs and zero weight rows contribute nothing).
    wh = jnp.zeros((H3_PAD, HEAD_W), f32)
    wh = wh.at[:64, :A].set(params["wmu"])
    wh = wh.at[:64, HALF:HALF + A].set(params["wsig"])
    wh = wh.astype(weight_dtype)
    bh = jnp.zeros((1, HEAD_W), f32)
    bh = bh.at[:, :A].set(params["bmu"].reshape(1, A))
    bh = bh.at[:, HALF:HALF + A].set(params["bsig"].reshape(1, A))

    return (w1, b1, w2, b2, w3, b3, wh, bh), A


def policy_net_forward(state, packed, action_dim, *, tb_max=2048,
                       act_dtype=None, return_packed=False):
    """state: [B, stateDim] float.  packed: output of prepare_params().

    act_dtype=None -> bf16 activations on the bf16-weight path, f32 otherwise
    (pass jnp.float32 explicitly on v5e, whose EUP has no bf16 fast path).
    return_packed=True returns the raw [B, 128] slab (mu in lanes [0, A),
    sigma in lanes [64, 64+A)) — avoids two extra slice dispatches at tiny B.
    """
    w1, b1, w2, b2, w3, b3, wh, bh = packed
    B, S = state.shape
    assert w1.shape[0] == S, "state dim does not match packed params"
    A = action_dim
    cdt = w1.dtype
    if act_dtype is None:
        act_dtype = jnp.bfloat16 if cdt == jnp.bfloat16 else jnp.float32

    # ---- batch tiling ----------------------------------------------------
    # >= 2 tiles whenever B >= 16 so v7x's two TensorCores both get work
    # (harmless on single-TC v5e/v6e); tiles are multiples of 8 rows; the
    # partial last tile is masked by Pallas (no batch padding, no x copy).
    tb_max = max(8, tb_max)
    if B < 16:
        TB = B                                    # single full-array tile
    else:
        TB = min(tb_max, _round_up((B + 1) // 2, 8))
    n_tiles = pl.cdiv(B, TB)

    # ---- cost estimate (advisory) ----------------------------------------
    flops = 2 * B * (S * H1 + H1 * H2 + H2 * H3_PAD + H3_PAD * HEAD_W)
    transc = B * (H1 + H2 + H3_PAD + HEAD_W)      # 3x tanh + exp
    wbytes = (S * H1 + H1 * H2 + H2 * H3_PAD + H3_PAD * HEAD_W) * jnp.dtype(cdt).itemsize
    bytes_accessed = B * (S * state.dtype.itemsize + HEAD_W * 4) + wbytes
    cost = pl.CostEstimate(flops=flops, transcendentals=transc,
                           bytes_accessed=bytes_accessed)

    resident = lambda i: (0, 0)   # weights/biases: same block for every tile
    # NOTE: pipeline_mode=pl.Buffered(1) on the resident specs would save
    # ~0.25 MB of VMEM double-buffering; skipped for portability (VMEM is not
    # the binding resource at these tile sizes).

    out = pl.pallas_call(
        functools.partial(_policy_kernel, act_dtype=act_dtype),
        out_shape=jax.ShapeDtypeStruct((B, HEAD_W), jnp.float32),
        grid=(n_tiles,),
        in_specs=[
            pl.BlockSpec((TB, S), lambda i: (i, 0)),     # x tile (unpadded S)
            pl.BlockSpec((S, H1), resident),
            pl.BlockSpec((1, H1), resident),
            pl.BlockSpec((H1, H2), resident),
            pl.BlockSpec((1, H2), resident),
            pl.BlockSpec((H2, H3_PAD), resident),
            pl.BlockSpec((1, H3_PAD), resident),
            pl.BlockSpec((H3_PAD, HEAD_W), resident),
            pl.BlockSpec((1, HEAD_W), resident),
        ],
        out_specs=pl.BlockSpec((TB, HEAD_W), lambda i: (i, 0)),
        compiler_params=pltpu.CompilerParams(
            dimension_semantics=("parallel",),
            vmem_limit_bytes=32 * 1024 * 1024),
        cost_estimate=cost,
    )(state, w1, b1, w2, b2, w3, b3, wh, bh)

    if return_packed:
        return out
    mu = out[:, :A]
    sigma = out[:, HALF:HALF + A]
    return mu, sigma


def init_params(key, state_dim, action_dim):
    """Deterministic synthetic init mirroring the PyTorch __init__ shapes.

    Weights stored transposed ([in, out]) for the kernel.  Xavier-normal for
    the first four layers (as in the module); sigma_fc uses a small init."""
    def xavier_normal(k, fan_in, fan_out):
        std = (2.0 / (fan_in + fan_out)) ** 0.5
        return std * jax.random.normal(k, (fan_in, fan_out), dtype=jnp.float32)

    def bias_uniform(k, fan_in, fan_out):
        bound = 1.0 / (fan_in ** 0.5)
        return jax.random.uniform(k, (1, fan_out), dtype=jnp.float32,
                                  minval=-bound, maxval=bound)

    ks = jax.random.split(key, 10)
    return {
        "w1": xavier_normal(ks[0], state_dim, 256),
        "b1": bias_uniform(ks[1], state_dim, 256),
        "w2": xavier_normal(ks[2], 256, 256),
        "b2": bias_uniform(ks[3], 256, 256),
        "w3": xavier_normal(ks[4], 256, 64),
        "b3": bias_uniform(ks[5], 256, 64),
        "wmu": xavier_normal(ks[6], 64, action_dim),
        "bmu": bias_uniform(ks[7], 64, action_dim),
        "wsig": 0.01 * jax.random.normal(ks[8], (64, action_dim),
                                         dtype=jnp.float32),
        "bsig": bias_uniform(ks[9], 64, action_dim),
    }


def _reference_forward(state, p):
    h = jnp.tanh(state @ p["w1"] + p["b1"])
    h = jnp.tanh(h @ p["w2"] + p["b2"])
    h = jnp.tanh(h @ p["w3"] + p["b3"])
    mu = h @ p["wmu"] + p["bmu"]
    sigma = jnp.exp(h @ p["wsig"] + p["bsig"])
    return mu, sigma


if __name__ == "__main__":
    B, STATE_DIM, ACTION_DIM = 2, 32, 8

    key = jax.random.PRNGKey(0)
    k_params, k_state, k_big = jax.random.split(key, 3)
    params = init_params(k_params, STATE_DIM, ACTION_DIM)
    state = jax.random.normal(k_state, (B, STATE_DIM), dtype=jnp.float32)
    mu_ref, sigma_ref = _reference_forward(state, params)

    # Default fast path: bf16 MXU inputs + bf16 tanh, f32 accumulation / exp.
    packed_bf16, A = prepare_params(params)                    # one-time pack
    mu, sigma = policy_net_forward(state, packed_bf16, A)
    jax.block_until_ready((mu, sigma))
    assert mu.shape == (B, ACTION_DIM) and sigma.shape == (B, ACTION_DIM)
    assert jnp.allclose(mu, mu_ref, atol=5e-2, rtol=5e-2)
    assert jnp.allclose(sigma, sigma_ref, atol=5e-2, rtol=5e-2)
    assert bool(jnp.all(sigma > 0.0))

    # f32 reference-precision path (weights kept f32, f32 activations).
    packed_f32, _ = prepare_params(params, weight_dtype=jnp.float32)
    mu32, sigma32 = policy_net_forward(state, packed_f32, A)
    jax.block_until_ready((mu32, sigma32))
    assert jnp.allclose(mu32, mu_ref, atol=1e-5, rtol=1e-5)
    assert jnp.allclose(sigma32, sigma_ref, atol=1e-5, rtol=1e-5)

    # Multi-tile grid with a partial last tile (B=300, TB=128 -> 3 tiles,
    # last tile only 44 valid rows): Pallas masks the out-of-bounds rows.
    big_state = jax.random.normal(k_big, (300, STATE_DIM), dtype=jnp.float32)
    mu_b, sigma_b = policy_net_forward(big_state, packed_bf16, A, tb_max=128)
    jax.block_until_ready((mu_b, sigma_b))
    mu_br, sigma_br = _reference_forward(big_state, params)
    assert mu_b.shape == (300, ACTION_DIM) and sigma_b.shape == (300, ACTION_DIM)
    assert jnp.allclose(mu_b, mu_br, atol=5e-2, rtol=5e-2)
    assert jnp.allclose(sigma_b, sigma_br, atol=5e-2, rtol=5e-2)
    assert bool(jnp.all(sigma_b > 0.0))

    # Packed [B, 128] slab (skips the two wrapper slices at tiny B).
    slab = policy_net_forward(state, packed_bf16, A, return_packed=True)
    jax.block_until_ready(slab)
    assert slab.shape == (B, HEAD_W)
    assert jnp.allclose(slab[:, :A], mu, atol=0.0, rtol=0.0)

    print("KERNEL_OK")
</pallas_src>

<mosaic_0001>
module attributes {stable_mosaic.version = 11 : i64} {
  func.func @_policy_kernel(%arg0: i32, %arg1: memref<2x32xf32, #tpu.memory_space<vmem>>, %arg2: memref<32x256xbf16, #tpu.memory_space<vmem>>, %arg3: memref<1x256xf32, #tpu.memory_space<vmem>>, %arg4: memref<256x256xbf16, #tpu.memory_space<vmem>>, %arg5: memref<1x256xf32, #tpu.memory_space<vmem>>, %arg6: memref<256x128xbf16, #tpu.memory_space<vmem>>, %arg7: memref<1x128xf32, #tpu.memory_space<vmem>>, %arg8: memref<128x128xbf16, #tpu.memory_space<vmem>>, %arg9: memref<1x128xf32, #tpu.memory_space<vmem>>, %arg10: memref<2x128xf32, #tpu.memory_space<vmem>>) attributes {dimension_semantics = [#tpu.dimension_semantics<parallel>], iteration_bounds = array<i64: 1>, scalar_prefetch = 0 : i64, scratch_operands = 0 : i64, tpu.core_type = #tpu.core_type<tc>, window_params = [{transform_indices = @transform_0, window_bounds = array<i64: 2, 32>}, {pipeline_mode = #tpu.pipeline_mode<synchronous>, transform_indices = @transform_1, window_bounds = array<i64: 32, 256>}, {pipeline_mode = #tpu.pipeline_mode<synchronous>, transform_indices = @transform_2, window_bounds = array<i64: 1, 256>}, {pipeline_mode = #tpu.pipeline_mode<synchronous>, transform_indices = @transform_3, window_bounds = array<i64: 256, 256>}, {pipeline_mode = #tpu.pipeline_mode<synchronous>, transform_indices = @transform_4, window_bounds = array<i64: 1, 256>}, {pipeline_mode = #tpu.pipeline_mode<synchronous>, transform_indices = @transform_5, window_bounds = array<i64: 256, 128>}, {pipeline_mode = #tpu.pipeline_mode<synchronous>, transform_indices = @transform_6, window_bounds = array<i64: 1, 128>}, {pipeline_mode = #tpu.pipeline_mode<synchronous>, transform_indices = @transform_7, window_bounds = array<i64: 128, 128>}, {pipeline_mode = #tpu.pipeline_mode<synchronous>, transform_indices = @transform_8, window_bounds = array<i64: 1, 128>}, {transform_indices = @transform_9, window_bounds = array<i64: 2, 128>}]} {
    %c0 = arith.constant 0 : index
    %c0_0 = arith.constant 0 : index
    %0 = vector.load %arg1[%c0, %c0_0] : memref<2x32xf32, #tpu.memory_space<vmem>>, vector<2x32xf32>
    %1 = arith.truncf %0 : vector<2x32xf32> to vector<2x32xbf16>
    %c0_1 = arith.constant 0 : index
    %c0_2 = arith.constant 0 : index
    %2 = vector.load %arg2[%c0_1, %c0_2] : memref<32x256xbf16, #tpu.memory_space<vmem>>, vector<32x256xbf16>
    %cst = arith.constant dense<0.000000e+00> : vector<2x256xf32>
    %3 = tpu.matmul %1, %2, %cst {dimension_numbers = #tpu.dot_dimension_numbers<[1], [0], [0], [1], [0, 0, 1, 1], [], []>} : vector<2x32xbf16>, vector<32x256xbf16>, vector<2x256xf32> -> vector<2x256xf32>
    %c0_3 = arith.constant 0 : index
    %c0_4 = arith.constant 0 : index
    %4 = vector.load %arg3[%c0_3, %c0_4] : memref<1x256xf32, #tpu.memory_space<vmem>>, vector<1x256xf32>
    %5 = vector.broadcast %4 : vector<1x256xf32> to vector<2x256xf32>
    %6 = arith.addf %3, %5 : vector<2x256xf32>
    %7 = arith.truncf %6 : vector<2x256xf32> to vector<2x256xbf16>
    %8 = math.tanh %7 : vector<2x256xbf16>
    %c0_5 = arith.constant 0 : index
    %c0_6 = arith.constant 0 : index
    %9 = vector.load %arg4[%c0_5, %c0_6] : memref<256x256xbf16, #tpu.memory_space<vmem>>, vector<256x256xbf16>
    %cst_7 = arith.constant dense<0.000000e+00> : vector<2x256xf32>
    %10 = tpu.matmul %8, %9, %cst_7 {dimension_numbers = #tpu.dot_dimension_numbers<[1], [0], [0], [1], [0, 0, 1, 1], [], []>} : vector<2x256xbf16>, vector<256x256xbf16>, vector<2x256xf32> -> vector<2x256xf32>
    %c0_8 = arith.constant 0 : index
    %c0_9 = arith.constant 0 : index
    %11 = vector.load %arg5[%c0_8, %c0_9] : memref<1x256xf32, #tpu.memory_space<vmem>>, vector<1x256xf32>
    %12 = vector.broadcast %11 : vector<1x256xf32> to vector<2x256xf32>
    %13 = arith.addf %10, %12 : vector<2x256xf32>
    %14 = arith.truncf %13 : vector<2x256xf32> to vector<2x256xbf16>
    %15 = math.tanh %14 : vector<2x256xbf16>
    %c0_10 = arith.constant 0 : index
    %c0_11 = arith.constant 0 : index
    %16 = vector.load %arg6[%c0_10, %c0_11] : memref<256x128xbf16, #tpu.memory_space<vmem>>, vector<256x128xbf16>
    %cst_12 = arith.constant dense<0.000000e+00> : vector<2x128xf32>
    %17 = tpu.matmul %15, %16, %cst_12 {dimension_numbers = #tpu.dot_dimension_numbers<[1], [0], [0], [1], [0, 0, 1, 1], [], []>} : vector<2x256xbf16>, vector<256x128xbf16>, vector<2x128xf32> -> vector<2x128xf32>
    %c0_13 = arith.constant 0 : index
    %c0_14 = arith.constant 0 : index
    %18 = vector.load %arg7[%c0_13, %c0_14] : memref<1x128xf32, #tpu.memory_space<vmem>>, vector<1x128xf32>
    %19 = vector.broadcast %18 : vector<1x128xf32> to vector<2x128xf32>
    %20 = arith.addf %17, %19 : vector<2x128xf32>
    %21 = arith.truncf %20 : vector<2x128xf32> to vector<2x128xbf16>
    %22 = math.tanh %21 : vector<2x128xbf16>
    %c0_15 = arith.constant 0 : index
    %c0_16 = arith.constant 0 : index
    %23 = vector.load %arg8[%c0_15, %c0_16] : memref<128x128xbf16, #tpu.memory_space<vmem>>, vector<128x128xbf16>
    %cst_17 = arith.constant dense<0.000000e+00> : vector<2x128xf32>
    %24 = tpu.matmul %22, %23, %cst_17 {dimension_numbers = #tpu.dot_dimension_numbers<[1], [0], [0], [1], [0, 0, 1, 1], [], []>} : vector<2x128xbf16>, vector<128x128xbf16>, vector<2x128xf32> -> vector<2x128xf32>
    %c0_18 = arith.constant 0 : index
    %c0_19 = arith.constant 0 : index
    %25 = vector.load %arg9[%c0_18, %c0_19] : memref<1x128xf32, #tpu.memory_space<vmem>>, vector<1x128xf32>
    %26 = vector.broadcast %25 : vector<1x128xf32> to vector<2x128xf32>
    %27 = arith.addf %24, %26 : vector<2x128xf32>
    %28 = tpu.iota {dimensions = array<i32: 1>} : vector<2x128xi32>
    %c64_i32 = arith.constant 64 : i32
    %29 = vector.broadcast %c64_i32 : i32 to vector<2x128xi32>
    %30 = arith.cmpi sge, %28, %29 : vector<2x128xi32>
    %cst_20 = arith.constant 0.000000e+00 : f32
    %31 = vector.broadcast %cst_20 : f32 to vector<2x128xf32>
    %32 = arith.select %30, %27, %31 : vector<2x128xi1>, vector<2x128xf32>
    %33 = math.exp %32 : vector<2x128xf32>
    %34 = arith.select %30, %33, %27 : vector<2x128xi1>, vector<2x128xf32>
    %c0_21 = arith.constant 0 : index
    %c0_22 = arith.constant 0 : index
    %35 = vector.load %arg10[%c0_21, %c0_22] : memref<2x128xf32, #tpu.memory_space<vmem>>, vector<2x128xf32>
    tpu.vector_store %arg10[%c0_21, %c0_22], %34 {strides = array<i32>} : memref<2x128xf32, #tpu.memory_space<vmem>>, vector<2x128xf32>,
    return
  }
  func.func @transform_0(%arg0: i32) -> (i32, i32) {
    %c0_i32 = arith.constant 0 : i32
    %c0_i32_0 = arith.constant 0 : i32
    return %arg0, %c0_i32 : i32, i32
  }
  func.func @transform_1(%arg0: i32) -> (i32, i32) {
    %c0_i32 = arith.constant 0 : i32
    %c0_i32_0 = arith.constant 0 : i32
    %c0_i32_1 = arith.constant 0 : i32
    return %c0_i32, %c0_i32_0 : i32, i32
  }
  func.func @transform_2(%arg0: i32) -> (i32, i32) {
    %c0_i32 = arith.constant 0 : i32
    %c0_i32_0 = arith.constant 0 : i32
    %c0_i32_1 = arith.constant 0 : i32
    return %c0_i32, %c0_i32_0 : i32, i32
  }
  func.func @transform_3(%arg0: i32) -> (i32, i32) {
    %c0_i32 = arith.constant 0 : i32
    %c0_i32_0 = arith.constant 0 : i32
    %c0_i32_1 = arith.constant 0 : i32
    return %c0_i32, %c0_i32_0 : i32, i32
  }
  func.func @transform_4(%arg0: i32) -> (i32, i32) {
    %c0_i32 = arith.constant 0 : i32
    %c0_i32_0 = arith.constant 0 : i32
    %c0_i32_1 = arith.constant 0 : i32
    return %c0_i32, %c0_i32_0 : i32, i32
  }
  func.func @transform_5(%arg0: i32) -> (i32, i32) {
    %c0_i32 = arith.constant 0 : i32
    %c0_i32_0 = arith.constant 0 : i32
    %c0_i32_1 = arith.constant 0 : i32
    return %c0_i32, %c0_i32_0 : i32, i32
  }
  func.func @transform_6(%arg0: i32) -> (i32, i32) {
    %c0_i32 = arith.constant 0 : i32
    %c0_i32_0 = arith.constant 0 : i32
    %c0_i32_1 = arith.constant 0 : i32
    return %c0_i32, %c0_i32_0 : i32, i32
  }
  func.func @transform_7(%arg0: i32) -> (i32, i32) {
    %c0_i32 = arith.constant 0 : i32
    %c0_i32_0 = arith.constant 0 : i32
    %c0_i32_1 = arith.constant 0 : i32
    return %c0_i32, %c0_i32_0 : i32, i32
  }
  func.func @transform_8(%arg0: i32) -> (i32, i32) {
    %c0_i32 = arith.constant 0 : i32
    %c0_i32_0 = arith.constant 0 : i32
    %c0_i32_1 = arith.constant 0 : i32
    return %c0_i32, %c0_i32_0 : i32, i32
  }
  func.func @transform_9(%arg0: i32) -> (i32, i32) {
    %c0_i32 = arith.constant 0 : i32
    %c0_i32_0 = arith.constant 0 : i32
    return %arg0, %c0_i32 : i32, i32
  }
}

</mosaic_0001>

<llo_original>
// kernel: tpu_custom_call.1
$region0: #{tpu_custom_call.1}
  #allocation0 [shape = 'u32[]', space=smem, size = 0x4, offset = 0x4, fixed_abs, tag = 'smem constant byte address 0x4 - core index']
  #allocation1 [shape = 'u32[72,128]{1,0:T(1,128)}', space=vmem, size = 0x9000, scoped, tag = 'internal scratch']
  %s0 = inlined_call_operand.hbm [shape: f32[2,32], index: 0, kind: input, shape index: {}]
  %s1 = inlined_call_operand.hbm [shape: bf16[32,256], index: 1, kind: input, shape index: {}]
  %s2 = inlined_call_operand.hbm [shape: f32[1,256], index: 2, kind: input, shape index: {}]
  %s3 = inlined_call_operand.hbm [shape: bf16[256,256], index: 3, kind: input, shape index: {}]
  %s4 = inlined_call_operand.vmem [shape: f32[1,256], index: 4, kind: input, shape index: {}]
  %s5 = inlined_call_operand.hbm [shape: bf16[256,128], index: 5, kind: input, shape index: {}]
  %s6 = inlined_call_operand.vmem [shape: f32[1,128], index: 6, kind: input, shape index: {}]
  %s7 = inlined_call_operand.hbm [shape: bf16[128,128], index: 7, kind: input, shape index: {}]
  %s8 = inlined_call_operand.vmem [shape: f32[1,128], index: 8, kind: input, shape index: {}]
  %s9 = inlined_call_operand.hbm [shape: f32[2,128], index: 9, kind: output, shape index: {}]
  %s10 = sld [smem:[#allocation0]]
  $region70: #{tpu_custom_call.1} parent=0
    _
  %s12 = ssub.s32 1, %s10
  %s13 = scalar_select 0, %s12, %s10
  $region1: #{tpu_custom_call.1} parent=0
    #allocation2 [shape = 'u8[1024]{0}', space=vmem, size = 0x400, scoped, tag = 'input window, operand 0, single buffered']
    #allocation3 [shape = 's32[1]{0}', space=sflag, size = 0x4, scoped, tag = 'scoped memory for tpu_custom_call.1']
    #allocation4 [shape = 's32[1]{0}', space=sflag, size = 0x4, scoped, tag = 'scoped memory for tpu_custom_call.1']
    #allocation5 [shape = 'u8[16384]{0}', space=vmem, size = 0x4000, scoped, tag = 'input window, operand 1, single buffered']
    #allocation6 [shape = 's32[1]{0}', space=sflag, size = 0x4, scoped, tag = 'scoped memory for tpu_custom_call.1']
    #allocation7 [shape = 'u8[1024]{0}', space=vmem, size = 0x400, scoped, tag = 'input window, operand 2, single buffered']
    #allocation8 [shape = 'u8[131072]{0}', space=vmem, size = 0x20000, scoped, tag = 'input window, operand 3, single buffered']
    #allocation9 [shape = 's32[1]{0}', space=sflag, size = 0x4, scoped, tag = 'scoped memory for tpu_custom_call.1']
    #allocation10 [shape = 'u8[65536]{0}', space=vmem, size = 0x10000, scoped, tag = 'input window, operand 5, single buffered']
    #allocation11 [shape = 'u8[32768]{0}', space=vmem, size = 0x8000, scoped, tag = 'input window, operand 7, single buffered']
    #allocation12 [shape = 's32[1]{0}', space=sflag, size = 0x4, scoped, tag = 'scoped memory for tpu_custom_call.1']
    #allocation13 [shape = 'u8[1024]{0}', space=vmem, size = 0x400, scoped, tag = 'output window, operand 0, single buffered']
    %14 = vsyncpa [#allocation3], 0
    %15 = vsyncpa [#allocation6], 0
    %16 = vsyncpa [#allocation9], 0
    %17 = vsyncpa [#allocation12], 0
    %18 = vsyncpa [#allocation4], 0
    // Predicated region
    $region2: #{tpu_custom_call.1} parent=1 // pred_check
      _
    $region3: #{tpu_custom_call.1} parent=1 // pred_check_branch
      %20 = sbr.rel (0) target = $region5
    $region4: #{tpu_custom_call.1} parent=1 // pred_region
      %22 = vsyncadd [#allocation3], 0
      %s24 = sshll.u32 %s0, 4
      %s25 = int_to_ptr.hbm [resolvable:$true] %s24
      %s26 = sshll.u32 [#allocation2], 4
      %s27 = int_to_ptr.vmem [resolvable:$true] %s26
      %29 = dma.hbm_to_vmem [thread:$0]  %s25, 32, %s27, [#allocation3]
    $region5: #{tpu_custom_call.1} parent=1 // pred_fallthru
      _
    // Predicated region
    $region6: #{tpu_custom_call.1} parent=1 // pred_check
      _
    $region7: #{tpu_custom_call.1} parent=1 // pred_check_branch
      %31 = sbr.rel (0) target = $region9
    $region8: #{tpu_custom_call.1} parent=1 // pred_region
      %33 = vsyncadd [#allocation6], 0
      %s34 = sshll.u32 %s1, 4
      %s35 = int_to_ptr.hbm [resolvable:$true] %s34
      %s36 = sshll.u32 [#allocation5], 4
      %s37 = int_to_ptr.vmem [resolvable:$true] %s36
      %42 = dma.hbm_to_vmem [thread:$0]  %s35, 512, %s37, [#allocation6], 128, 128, 8
    $region9: #{tpu_custom_call.1} parent=1 // pred_fallthru
      _
    // Predicated region
    $region10: #{tpu_custom_call.1} parent=1 // pred_check
      _
    $region11: #{tpu_custom_call.1} parent=1 // pred_check_branch
      %44 = sbr.rel (0) target = $region13
    $region12: #{tpu_custom_call.1} parent=1 // pred_region
      %46 = vsyncadd [#allocation6], 0
      %s48 = sshll.u32 %s2, 4
      %s49 = int_to_ptr.hbm [resolvable:$true] %s48
      %s50 = sshll.u32 [#allocation7], 4
      %s51 = int_to_ptr.vmem [resolvable:$true] %s50
      %53 = dma.hbm_to_vmem [thread:$0]  %s49, 32, %s51, [#allocation6]
    $region13: #{tpu_custom_call.1} parent=1 // pred_fallthru
      _
    // Predicated region
    $region14: #{tpu_custom_call.1} parent=1 // pred_check
      _
    $region15: #{tpu_custom_call.1} parent=1 // pred_check_branch
      %55 = sbr.rel (0) target = $region17
    $region16: #{tpu_custom_call.1} parent=1 // pred_region
      %57 = vsyncadd [#allocation9], 0
      %s58 = sshll.u32 %s3, 4
      %s59 = int_to_ptr.hbm [resolvable:$true] %s58
      %s60 = sshll.u32 [#allocation8], 4
      %s61 = int_to_ptr.vmem [resolvable:$true] %s60
      %66 = dma.hbm_to_vmem [thread:$0]  %s59, 4096, %s61, [#allocation9], 128, 128, 8
    $region17: #{tpu_custom_call.1} parent=1 // pred_fallthru
      _
    // Predicated region
    $region18: #{tpu_custom_call.1} parent=1 // pred_check
      _
    $region19: #{tpu_custom_call.1} parent=1 // pred_check_branch
      %68 = sbr.rel (0) target = $region21
    $region20: #{tpu_custom_call.1} parent=1 // pred_region
      _
    $region21: #{tpu_custom_call.1} parent=1 // pred_fallthru
      _
    // Predicated region
    $region22: #{tpu_custom_call.1} parent=1 // pred_check
      _
    $region23: #{tpu_custom_call.1} parent=1 // pred_check_branch
      %70 = sbr.rel (0) target = $region25
    $region24: #{tpu_custom_call.1} parent=1 // pred_region
      %72 = vsyncadd [#allocation9], 0
      %s73 = sshll.u32 %s5, 4
      %s74 = int_to_ptr.hbm [resolvable:$true] %s73
      %s75 = sshll.u32 [#allocation10], 4
      %s76 = int_to_ptr.vmem [resolvable:$true] %s75
      %81 = dma.hbm_to_vmem [thread:$0]  %s74, 2048, %s76, [#allocation9], 64, 64, 4
    $region25: #{tpu_custom_call.1} parent=1 // pred_fallthru
      _
    // Predicated region
    $region26: #{tpu_custom_call.1} parent=1 // pred_check
      _
    $region27: #{tpu_custom_call.1} parent=1 // pred_check_branch
      %83 = sbr.rel (0) target = $region29
    $region28: #{tpu_custom_call.1} parent=1 // pred_region
      _
    $region29: #{tpu_custom_call.1} parent=1 // pred_fallthru
      _
    // Predicated region
    $region30: #{tpu_custom_call.1} parent=1 // pred_check
      _
    $region31: #{tpu_custom_call.1} parent=1 // pred_check_branch
      %85 = sbr.rel (0) target = $region33
    $region32: #{tpu_custom_call.1} parent=1 // pred_region
      %87 = vsyncadd [#allocation12], 0
      %s88 = sshll.u32 %s7, 4
      %s89 = int_to_ptr.hbm [resolvable:$true] %s88
      %s90 = sshll.u32 [#allocation11], 4
      %s91 = int_to_ptr.vmem [resolvable:$true] %s90
      %96 = dma.hbm_to_vmem [thread:$0]  %s89, 1024, %s91, [#allocation12], 64, 64, 4
    $region33: #{tpu_custom_call.1} parent=1 // pred_fallthru
      _
    // Predicated region
    $region34: #{tpu_custom_call.1} parent=1 // pred_check
      _
    $region35: #{tpu_custom_call.1} parent=1 // pred_check_branch
      %98 = sbr.rel (0) target = $region37
    $region36: #{tpu_custom_call.1} parent=1 // pred_region
      _
    $region37: #{tpu_custom_call.1} parent=1 // pred_fallthru
      _
    // Predicated region
    $region38: #{tpu_custom_call.1} parent=1 // pred_check
      _
    $region39: #{tpu_custom_call.1} parent=1 // pred_check_branch
      %100 = sbr.rel (0) target = $region41
    $region40: #{tpu_custom_call.1} parent=1 // pred_region
      %102 = dma.done [#allocation3], 32
    $region41: #{tpu_custom_call.1} parent=1 // pred_fallthru
      _
    // Predicated region
    $region42: #{tpu_custom_call.1} parent=1 // pred_check
      _
    $region43: #{tpu_custom_call.1} parent=1 // pred_check_branch
      %104 = sbr.rel (0) target = $region45
    $region44: #{tpu_custom_call.1} parent=1 // pred_region
      %106 = dma.done [#allocation6], 512
    $region45: #{tpu_custom_call.1} parent=1 // pred_fallthru
      _
    // Predicated region
    $region46: #{tpu_custom_call.1} parent=1 // pred_check
      _
    $region47: #{tpu_custom_call.1} parent=1 // pred_check_branch
      %108 = sbr.rel (0) target = $region49
    $region48: #{tpu_custom_call.1} parent=1 // pred_region
      %110 = dma.done [#allocation6], 32
    $region49: #{tpu_custom_call.1} parent=1 // pred_fallthru
      _
    // Predicated region
    $region50: #{tpu_custom_call.1} parent=1 // pred_check
      _
    $region51: #{tpu_custom_call.1} parent=1 // pred_check_branch
      %112 = sbr.rel (0) target = $region53
    $region52: #{tpu_custom_call.1} parent=1 // pred_region
      %114 = dma.done [#allocation9], 4096
    $region53: #{tpu_custom_call.1} parent=1 // pred_fallthru
      _
    // Predicated region
    $region54: #{tpu_custom_call.1} parent=1 // pred_check
      _
    $region55: #{tpu_custom_call.1} parent=1 // pred_check_branch
      %116 = sbr.rel (0) target = $region57
    $region56: #{tpu_custom_call.1} parent=1 // pred_region
      %118 = dma.done [#allocation9], 2048
    $region57: #{tpu_custom_call.1} parent=1 // pred_fallthru
      _
    // Predicated region
    $region58: #{tpu_custom_call.1} parent=1 // pred_check
      _
    $region59: #{tpu_custom_call.1} parent=1 // pred_check_branch
      %120 = sbr.rel (0) target = $region61
    $region60: #{tpu_custom_call.1} parent=1 // pred_region
      %122 = dma.done [#allocation12], 1024
    $region61: #{tpu_custom_call.1} parent=1 // pred_fallthru
      _
    %v124 = vld [vmem:[#allocation2] sm:$0x3]
    %v125 = vpack.c.bf16 %v124, %v124
    %v126 = vld [vmem:[#allocation5] sm:$0xff]
    %v127 = vld [vmem:[#allocation5 + $0x8] sm:$0xff]
    %v128 = vld [vmem:[#allocation5 + $0x10] sm:$0xff]
    %v129 = vld [vmem:[#allocation5 + $0x18] sm:$0xff]
    %v130 = vld [vmem:[#allocation7] sm:$0x3]
    %v132 = vperm.slane %v130, 0
    %v133 = vperm.slane %v130, 1
    %v140 = vunpack.c.l.b16 %v126
    %v141 = vunpack.c.h.b16 %v126
    %v142 = vunpack.c.l.b16 %v127
    %v143 = vunpack.c.h.b16 %v127
    %v144 = vunpack.c.l.b16 %v128
    %v145 = vunpack.c.h.b16 %v128
    %v146 = vunpack.c.l.b16 %v129
    %v147 = vunpack.c.h.b16 %v129
    %v148 = vpack.c.b16 %v142, %v140
    %v149 = vpack.c.b16 %v143, %v141
    %v150 = vpack.c.b16 %v146, %v144
    %v151 = vpack.c.b16 %v147, %v145
    %vm156 = vcmask 261120
    %v158 = vsel %vm156, %v125, 0
    %160 = vmatpush.bf16.msra.mxu0 0
    %161 = vmatpush.bf16.msra.mxu0 0
    %162 = vmatpush.bf16.msra.mxu0 0
    %163 = vmatpush.bf16.msra.mxu0 0
    %164 = vmatpush.bf16.msra.mxu0 0
    %165 = vmatpush.bf16.msra.mxu0 0
    %166 = vmatpush.bf16.msra.mxu0 %v150
    %167 = vmatpush.bf16.msra.mxu0 %v148
    %168 = vmatmul.bf16.gmra.mxu0 %v158
    %v169 = vpop.f32.mrf.mxu0
    %v170 = vadd.f32 %v132, %v169
    %v171 = vpop.f32.mrf.mxu0
    %172 = vdwg.mxu0
    %173 = vmatpush.bf16.msra.mxu0 0
    %174 = vmatpush.bf16.msra.mxu0 0
    %175 = vmatpush.bf16.msra.mxu0 0
    %176 = vmatpush.bf16.msra.mxu0 0
    %177 = vmatpush.bf16.msra.mxu0 0
    %178 = vmatpush.bf16.msra.mxu0 0
    %179 = vmatpush.bf16.msra.mxu0 %v151
    %180 = vmatpush.bf16.msra.mxu0 %v149
    %181 = vmatmul.bf16.gmra.mxu0 %v158
    %v182 = vpop.f32.mrf.mxu0
    %v183 = vadd.f32 %v133, %v182
    %v184 = vpop.f32.mrf.mxu0
    %185 = vdwg.mxu0
    %v186 = vpack.c.bf16 %v170, %v170
    %v187 = vpack.c.bf16 %v183, %v183
    %v188 = vunpack.c.l.bf16 %v186
    %v189 = vunpack.c.l.bf16 %v187
    %v190 = vtanh.pop %v188
    %v191 = vtanh.pop %v189
    %v192 = vpack.c.bf16 %v190, %v190
    %v193 = vpack.c.bf16 %v191, %v191
    %v194 = vld [vmem:[#allocation8] sm:$0xff]
    %v195 = vld [vmem:[#allocation8 + $0x8] sm:$0xff]
    %v196 = vld [vmem:[#allocation8 + $0x10] sm:$0xff]
    %v197 = vld [vmem:[#allocation8 + $0x18] sm:$0xff]
    %v198 = vld [vmem:[#allocation8 + $0x20] sm:$0xff]
    %v199 = vld [vmem:[#allocation8 + $0x28] sm:$0xff]
    %v200 = vld [vmem:[#allocation8 + $0x30] sm:$0xff]
    %v201 = vld [vmem:[#allocation8 + $0x38] sm:$0xff]
    %v202 = vld [vmem:[#allocation8 + $0x40] sm:$0xff]
    %v203 = vld [vmem:[#allocation8 + $0x48] sm:$0xff]
    %v204 = vld [vmem:[#allocation8 + $0x50] sm:$0xff]
    %v205 = vld [vmem:[#allocation8 + $0x58] sm:$0xff]
    %v206 = vld [vmem:[#allocation8 + $0x60] sm:$0xff]
    %v207 = vld [vmem:[#allocation8 + $0x68] sm:$0xff]
    %v208 = vld [vmem:[#allocation8 + $0x70] sm:$0xff]
    %v209 = vld [vmem:[#allocation8 + $0x78] sm:$0xff]
    %v210 = vld [vmem:[#allocation8 + $0x80] sm:$0xff]
    %v211 = vld [vmem:[#allocation8 + $0x88] sm:$0xff]
    %v212 = vld [vmem:[#allocation8 + $0x90] sm:$0xff]
    %v213 = vld [vmem:[#allocation8 + $0x98] sm:$0xff]
    %v214 = vld [vmem:[#allocation8 + $0xa0] sm:$0xff]
    %v215 = vld [vmem:[#allocation8 + $0xa8] sm:$0xff]
    %v216 = vld [vmem:[#allocation8 + $0xb0] sm:$0xff]
    %v217 = vld [vmem:[#allocation8 + $0xb8] sm:$0xff]
    %v218 = vld [vmem:[#allocation8 + $0xc0] sm:$0xff]
    %v219 = vld [vmem:[#allocation8 + $0xc8] sm:$0xff]
    %v220 = vld [vmem:[#allocation8 + $0xd0] sm:$0xff]
    %v221 = vld [vmem:[#allocation8 + $0xd8] sm:$0xff]
    %v222 = vld [vmem:[#allocation8 + $0xe0] sm:$0xff]
    %v223 = vld [vmem:[#allocation8 + $0xe8] sm:$0xff]
    %v224 = vld [vmem:[#allocation8 + $0xf0] sm:$0xff]
    %v225 = vld [vmem:[#allocation8 + $0xf8] sm:$0xff]
    %v226 = vld [vmem:[%s4] sm:$0x3]
    %v228 = vperm.slane %v226, 0
    %v229 = vperm.slane %v226, 1
    %v264 = vunpack.c.l.b16 %v194
    %v265 = vunpack.c.h.b16 %v194
    %v266 = vunpack.c.l.b16 %v195
    %v267 = vunpack.c.h.b16 %v195
    %v268 = vunpack.c.l.b16 %v196
    %v269 = vunpack.c.h.b16 %v196
    %v270 = vunpack.c.l.b16 %v197
    %v271 = vunpack.c.h.b16 %v197
    %v272 = vunpack.c.l.b16 %v198
    %v273 = vunpack.c.h.b16 %v198
    %v274 = vunpack.c.l.b16 %v199
    %v275 = vunpack.c.h.b16 %v199
    %v276 = vunpack.c.l.b16 %v200
    %v277 = vunpack.c.h.b16 %v200
    %v278 = vunpack.c.l.b16 %v201
    %v279 = vunpack.c.h.b16 %v201
    %v280 = vunpack.c.l.b16 %v202
    %v281 = vunpack.c.h.b16 %v202
    %v282 = vunpack.c.l.b16 %v203
    %v283 = vunpack.c.h.b16 %v203
    %v284 = vunpack.c.l.b16 %v204
    %v285 = vunpack.c.h.b16 %v204
    %v286 = vunpack.c.l.b16 %v205
    %v287 = vunpack.c.h.b16 %v205
    %v288 = vunpack.c.l.b16 %v206
    %v289 = vunpack.c.h.b16 %v206
    %v290 = vunpack.c.l.b16 %v207
    %v291 = vunpack.c.h.b16 %v207
    %v292 = vunpack.c.l.b16 %v208
    %v293 = vunpack.c.h.b16 %v208
    %v294 = vunpack.c.l.b16 %v209
    %v295 = vunpack.c.h.b16 %v209
    %v296 = vunpack.c.l.b16 %v210
    %v297 = vunpack.c.h.b16 %v210
    %v298 = vunpack.c.l.b16 %v211
    %v299 = vunpack.c.h.b16 %v211
    %v300 = vunpack.c.l.b16 %v212
    %v301 = vunpack.c.h.b16 %v212
    %v302 = vunpack.c.l.b16 %v213
    %v303 = vunpack.c.h.b16 %v213
    %v304 = vunpack.c.l.b16 %v214
    %v305 = vunpack.c.h.b16 %v214
    %v306 = vunpack.c.l.b16 %v215
    %v307 = vunpack.c.h.b16 %v215
    %v308 = vunpack.c.l.b16 %v216
    %v309 = vunpack.c.h.b16 %v216
    %v310 = vunpack.c.l.b16 %v217
    %v311 = vunpack.c.h.b16 %v217
    %v312 = vunpack.c.l.b16 %v218
    %v313 = vunpack.c.h.b16 %v218
    %v314 = vunpack.c.l.b16 %v219
    %v315 = vunpack.c.h.b16 %v219
    %v316 = vunpack.c.l.b16 %v220
    %v317 = vunpack.c.h.b16 %v220
    %v318 = vunpack.c.l.b16 %v221
    %v319 = vunpack.c.h.b16 %v221
    %v320 = vunpack.c.l.b16 %v222
    %v321 = vunpack.c.h.b16 %v222
    %v322 = vunpack.c.l.b16 %v223
    %v323 = vunpack.c.h.b16 %v223
    %v324 = vunpack.c.l.b16 %v224
    %v325 = vunpack.c.h.b16 %v224
    %v326 = vunpack.c.l.b16 %v225
    %v327 = vunpack.c.h.b16 %v225
    %v328 = vpack.c.b16 %v266, %v264
    %v329 = vpack.c.b16 %v267, %v265
    %v330 = vpack.c.b16 %v270, %v268
    %v331 = vpack.c.b16 %v271, %v269
    %v332 = vpack.c.b16 %v274, %v272
    %v333 = vpack.c.b16 %v275, %v273
    %v334 = vpack.c.b16 %v278, %v276
    %v335 = vpack.c.b16 %v279, %v277
    %v336 = vpack.c.b16 %v282, %v280
    %v337 = vpack.c.b16 %v283, %v281
    %v338 = vpack.c.b16 %v286, %v284
    %v339 = vpack.c.b16 %v287, %v285
    %v340 = vpack.c.b16 %v290, %v288
    %v341 = vpack.c.b16 %v291, %v289
    %v342 = vpack.c.b16 %v294, %v292
    %v343 = vpack.c.b16 %v295, %v293
    %v344 = vpack.c.b16 %v298, %v296
    %v345 = vpack.c.b16 %v299, %v297
    %v346 = vpack.c.b16 %v302, %v300
    %v347 = vpack.c.b16 %v303, %v301
    %v348 = vpack.c.b16 %v306, %v304
    %v349 = vpack.c.b16 %v307, %v305
    %v350 = vpack.c.b16 %v310, %v308
    %v351 = vpack.c.b16 %v311, %v309
    %v352 = vpack.c.b16 %v314, %v312
    %v353 = vpack.c.b16 %v315, %v313
    %v354 = vpack.c.b16 %v318, %v316
    %v355 = vpack.c.b16 %v319, %v317
    %v356 = vpack.c.b16 %v322, %v320
    %v357 = vpack.c.b16 %v323, %v321
    %v358 = vpack.c.b16 %v326, %v324
    %v359 = vpack.c.b16 %v327, %v325
    %392 = vmatpush.bf16.msra.mxu0 %v342
    %393 = vmatpush.bf16.msra.mxu0 %v340
    %394 = vmatpush.bf16.msra.mxu0 %v338
    %395 = vmatpush.bf16.msra.mxu0 %v336
    %396 = vmatpush.bf16.msra.mxu0 %v334
    %397 = vmatpush.bf16.msra.mxu0 %v332
    %398 = vmatpush.bf16.msra.mxu0 %v330
    %399 = vmatpush.bf16.msra.mxu0 %v328
    %400 = vmatmul.bf16.gmra.mxu0 %v192
    %v401 = vpop.f32.mrf.mxu0
    %v402 = vadd.f32 %v228, %v401
    %v403 = vpop.f32.mrf.mxu0
    %404 = vdwg.mxu0
    %405 = vmatpush.bf16.msra.mxu0 %v358
    %406 = vmatpush.bf16.msra.mxu0 %v356
    %407 = vmatpush.bf16.msra.mxu0 %v354
    %408 = vmatpush.bf16.msra.mxu0 %v352
    %409 = vmatpush.bf16.msra.mxu0 %v350
    %410 = vmatpush.bf16.msra.mxu0 %v348
    %411 = vmatpush.bf16.msra.mxu0 %v346
    %412 = vmatpush.bf16.msra.mxu0 %v344
    %413 = vmatmul.bf16.gmra.mxu0 %v193
    %v414 = vpop.f32.mrf.mxu0
    %v415 = vadd.f32 %v402, %v414
    %v416 = vpop.f32.mrf.mxu0
    %417 = vdwg.mxu0
    %418 = vmatpush.bf16.msra.mxu0 %v343
    %419 = vmatpush.bf16.msra.mxu0 %v341
    %420 = vmatpush.bf16.msra.mxu0 %v339
    %421 = vmatpush.bf16.msra.mxu0 %v337
    %422 = vmatpush.bf16.msra.mxu0 %v335
    %423 = vmatpush.bf16.msra.mxu0 %v333
    %424 = vmatpush.bf16.msra.mxu0 %v331
    %425 = vmatpush.bf16.msra.mxu0 %v329
    %426 = vmatmul.bf16.gmra.mxu0 %v192
    %v427 = vpop.f32.mrf.mxu0
    %v428 = vadd.f32 %v229, %v427
    %v429 = vpop.f32.mrf.mxu0
    %430 = vdwg.mxu0
    %431 = vmatpush.bf16.msra.mxu0 %v359
    %432 = vmatpush.bf16.msra.mxu0 %v357
    %433 = vmatpush.bf16.msra.mxu0 %v355
    %434 = vmatpush.bf16.msra.mxu0 %v353
    %435 = vmatpush.bf16.msra.mxu0 %v351
    %436 = vmatpush.bf16.msra.mxu0 %v349
    %437 = vmatpush.bf16.msra.mxu0 %v347
    %438 = vmatpush.bf16.msra.mxu0 %v345
    %439 = vmatmul.bf16.gmra.mxu0 %v193
    %v440 = vpop.f32.mrf.mxu0
    %v441 = vadd.f32 %v428, %v440
    %v442 = vpop.f32.mrf.mxu0
    %443 = vdwg.mxu0
    %v444 = vpack.c.bf16 %v415, %v415
    %v445 = vpack.c.bf16 %v441, %v441
    %v446 = vunpack.c.l.bf16 %v444
    %v447 = vunpack.c.l.bf16 %v445
    %v448 = vtanh.pop %v446
    %v449 = vtanh.pop %v447
    %v450 = vpack.c.bf16 %v448, %v448
    %v451 = vpack.c.bf16 %v449, %v449
    %v452 = vld [vmem:[#allocation10] sm:$0xf]
    %v453 = vld [vmem:[#allocation10 + $0x4] sm:$0xf]
    %v454 = vld [vmem:[#allocation10 + $0x8] sm:$0xf]
    %v455 = vld [vmem:[#allocation10 + $0xc] sm:$0xf]
    %v456 = vld [vmem:[#allocation10 + $0x10] sm:$0xf]
    %v457 = vld [vmem:[#allocation10 + $0x14] sm:$0xf]
    %v458 = vld [vmem:[#allocation10 + $0x18] sm:$0xf]
    %v459 = vld [vmem:[#allocation10 + $0x1c] sm:$0xf]
    %v460 = vld [vmem:[#allocation10 + $0x20] sm:$0xf]
    %v461 = vld [vmem:[#allocation10 + $0x24] sm:$0xf]
    %v462 = vld [vmem:[#allocation10 + $0x28] sm:$0xf]
    %v463 = vld [vmem:[#allocation10 + $0x2c] sm:$0xf]
    %v464 = vld [vmem:[#allocation10 + $0x30] sm:$0xf]
    %v465 = vld [vmem:[#allocation10 + $0x34] sm:$0xf]
    %v466 = vld [vmem:[#allocation10 + $0x38] sm:$0xf]
    %v467 = vld [vmem:[#allocation10 + $0x3c] sm:$0xf]
    %v468 = vld [vmem:[#allocation10 + $0x40] sm:$0xf]
    %v469 = vld [vmem:[#allocation10 + $0x44] sm:$0xf]
    %v470 = vld [vmem:[#allocation10 + $0x48] sm:$0xf]
    %v471 = vld [vmem:[#allocation10 + $0x4c] sm:$0xf]
    %v472 = vld [vmem:[#allocation10 + $0x50] sm:$0xf]
    %v473 = vld [vmem:[#allocation10 + $0x54] sm:$0xf]
    %v474 = vld [vmem:[#allocation10 + $0x58] sm:$0xf]
    %v475 = vld [vmem:[#allocation10 + $0x5c] sm:$0xf]
    %v476 = vld [vmem:[#allocation10 + $0x60] sm:$0xf]
    %v477 = vld [vmem:[#allocation10 + $0x64] sm:$0xf]
    %v478 = vld [vmem:[#allocation10 + $0x68] sm:$0xf]
    %v479 = vld [vmem:[#allocation10 + $0x6c] sm:$0xf]
    %v480 = vld [vmem:[#allocation10 + $0x70] sm:$0xf]
    %v481 = vld [vmem:[#allocation10 + $0x74] sm:$0xf]
    %v482 = vld [vmem:[#allocation10 + $0x78] sm:$0xf]
    %v483 = vld [vmem:[#allocation10 + $0x7c] sm:$0xf]
    %v484 = vld [vmem:[%s6] sm:$0x1]
    %v486 = vperm.slane %v484, 0
    %v520 = vunpack.c.l.b16 %v452
    %v521 = vunpack.c.l.b16 %v453
    %v522 = vunpack.c.l.b16 %v454
    %v523 = vunpack.c.l.b16 %v455
    %v524 = vunpack.c.l.b16 %v456
    %v525 = vunpack.c.l.b16 %v457
    %v526 = vunpack.c.l.b16 %v458
    %v527 = vunpack.c.l.b16 %v459
    %v528 = vunpack.c.l.b16 %v460
    %v529 = vunpack.c.l.b16 %v461
    %v530 = vunpack.c.l.b16 %v462
    %v531 = vunpack.c.l.b16 %v463
    %v532 = vunpack.c.l.b16 %v464
    %v533 = vunpack.c.l.b16 %v465
    %v534 = vunpack.c.l.b16 %v466
    %v535 = vunpack.c.l.b16 %v467
    %v536 = vunpack.c.l.b16 %v468
    %v537 = vunpack.c.l.b16 %v469
    %v538 = vunpack.c.l.b16 %v470
    %v539 = vunpack.c.l.b16 %v471
    %v540 = vunpack.c.l.b16 %v472
    %v541 = vunpack.c.l.b16 %v473
    %v542 = vunpack.c.l.b16 %v474
    %v543 = vunpack.c.l.b16 %v475
    %v544 = vunpack.c.l.b16 %v476
    %v545 = vunpack.c.l.b16 %v477
    %v546 = vunpack.c.l.b16 %v478
    %v547 = vunpack.c.l.b16 %v479
    %v548 = vunpack.c.l.b16 %v480
    %v549 = vunpack.c.l.b16 %v481
    %v550 = vunpack.c.l.b16 %v482
    %v551 = vunpack.c.l.b16 %v483
    %v552 = vpack.c.b16 %v521, %v520
    %v553 = vpack.c.b16 %v523, %v522
    %v554 = vpack.c.b16 %v525, %v524
    %v555 = vpack.c.b16 %v527, %v526
    %v556 = vpack.c.b16 %v529, %v528
    %v557 = vpack.c.b16 %v531, %v530
    %v558 = vpack.c.b16 %v533, %v532
    %v559 = vpack.c.b16 %v535, %v534
    %v560 = vpack.c.b16 %v537, %v536
    %v561 = vpack.c.b16 %v539, %v538
    %v562 = vpack.c.b16 %v541, %v540
    %v563 = vpack.c.b16 %v543, %v542
    %v564 = vpack.c.b16 %v545, %v544
    %v565 = vpack.c.b16 %v547, %v546
    %v566 = vpack.c.b16 %v549, %v548
    %v567 = vpack.c.b16 %v551, %v550
    %584 = vmatpush.bf16.msra.mxu0 %v559
    %585 = vmatpush.bf16.msra.mxu0 %v558
    %586 = vmatpush.bf16.msra.mxu0 %v557
    %587 = vmatpush.bf16.msra.mxu0 %v556
    %588 = vmatpush.bf16.msra.mxu0 %v555
    %589 = vmatpush.bf16.msra.mxu0 %v554
    %590 = vmatpush.bf16.msra.mxu0 %v553
    %591 = vmatpush.bf16.msra.mxu0 %v552
    %592 = vmatmul.bf16.gmra.mxu0 %v450
    %v593 = vpop.f32.mrf.mxu0
    %v594 = vadd.f32 %v486, %v593
    %v595 = vpop.f32.mrf.mxu0
    %596 = vdwg.mxu0
    %597 = vmatpush.bf16.msra.mxu0 %v567
    %598 = vmatpush.bf16.msra.mxu0 %v566
    %599 = vmatpush.bf16.msra.mxu0 %v565
    %600 = vmatpush.bf16.msra.mxu0 %v564
    %601 = vmatpush.bf16.msra.mxu0 %v563
    %602 = vmatpush.bf16.msra.mxu0 %v562
    %603 = vmatpush.bf16.msra.mxu0 %v561
    %604 = vmatpush.bf16.msra.mxu0 %v560
    %605 = vmatmul.bf16.gmra.mxu0 %v451
    %v606 = vpop.f32.mrf.mxu0
    %v607 = vadd.f32 %v594, %v606
    %v608 = vpop.f32.mrf.mxu0
    %609 = vdwg.mxu0
    %v610 = vpack.c.bf16 %v607, %v607
    %v611 = vunpack.c.l.bf16 %v610
    %v612 = vtanh.pop %v611
    %v613 = vpack.c.bf16 %v612, %v612
    %v614 = vld [vmem:[#allocation11] sm:$0xf]
    %v615 = vld [vmem:[#allocation11 + $0x4] sm:$0xf]
    %v616 = vld [vmem:[#allocation11 + $0x8] sm:$0xf]
    %v617 = vld [vmem:[#allocation11 + $0xc] sm:$0xf]
    %v618 = vld [vmem:[#allocation11 + $0x10] sm:$0xf]
    %v619 = vld [vmem:[#allocation11 + $0x14] sm:$0xf]
    %v620 = vld [vmem:[#allocation11 + $0x18] sm:$0xf]
    %v621 = vld [vmem:[#allocation11 + $0x1c] sm:$0xf]
    %v622 = vld [vmem:[#allocation11 + $0x20] sm:$0xf]
    %v623 = vld [vmem:[#allocation11 + $0x24] sm:$0xf]
    %v624 = vld [vmem:[#allocation11 + $0x28] sm:$0xf]
    %v625 = vld [vmem:[#allocation11 + $0x2c] sm:$0xf]
    %v626 = vld [vmem:[#allocation11 + $0x30] sm:$0xf]
    %v627 = vld [vmem:[#allocation11 + $0x34] sm:$0xf]
    %v628 = vld [vmem:[#allocation11 + $0x38] sm:$0xf]
    %v629 = vld [vmem:[#allocation11 + $0x3c] sm:$0xf]
    %v630 = vld [vmem:[%s8] sm:$0x1]
    %v632 = vperm.slane %v630, 0
    %v650 = vunpack.c.l.b16 %v614
    %v651 = vunpack.c.l.b16 %v615
    %v652 = vunpack.c.l.b16 %v616
    %v653 = vunpack.c.l.b16 %v617
    %v654 = vunpack.c.l.b16 %v618
    %v655 = vunpack.c.l.b16 %v619
    %v656 = vunpack.c.l.b16 %v620
    %v657 = vunpack.c.l.b16 %v621
    %v658 = vunpack.c.l.b16 %v622
    %v659 = vunpack.c.l.b16 %v623
    %v660 = vunpack.c.l.b16 %v624
    %v661 = vunpack.c.l.b16 %v625
    %v662 = vunpack.c.l.b16 %v626
    %v663 = vunpack.c.l.b16 %v627
    %v664 = vunpack.c.l.b16 %v628
    %v665 = vunpack.c.l.b16 %v629
    %v666 = vpack.c.b16 %v651, %v650
    %v667 = vpack.c.b16 %v653, %v652
    %v668 = vpack.c.b16 %v655, %v654
    %v669 = vpack.c.b16 %v657, %v656
    %v670 = vpack.c.b16 %v659, %v658
    %v671 = vpack.c.b16 %v661, %v660
    %v672 = vpack.c.b16 %v663, %v662
    %v673 = vpack.c.b16 %v665, %v664
    %682 = vmatpush.bf16.msra.mxu0 %v673
    %683 = vmatpush.bf16.msra.mxu0 %v672
    %684 = vmatpush.bf16.msra.mxu0 %v671
    %685 = vmatpush.bf16.msra.mxu0 %v670
    %686 = vmatpush.bf16.msra.mxu0 %v669
    %687 = vmatpush.bf16.msra.mxu0 %v668
    %688 = vmatpush.bf16.msra.mxu0 %v667
    %689 = vmatpush.bf16.msra.mxu0 %v666
    %690 = vmatmul.bf16.gmra.mxu0 %v613
    %v691 = vpop.f32.mrf.mxu0
    %v692 = vadd.f32 %v632, %v691
    %v693 = vpop.f32.mrf.mxu0
    %694 = vdwg.mxu0
    %v695 = vlaneseq
    %v696 = vand.u32 %v695, 127
    %vm697 = vcmp.ge.s32.totalorder %v696, 64
    %v698 = vsel %vm697, %v692, 0.0
    %v699 = vmul.f32 %v698, 1.442695
    %v700 = vpow.pop %v699
    %v701 = vsel %vm697, %v700, %v692
    %702 = vst [vmem:[#allocation13] sm:$0x3] %v701
    // Predicated region
    $region62: #{tpu_custom_call.1} parent=1 // pred_check
      _
    $region63: #{tpu_custom_call.1} parent=1 // pred_check_branch
      %704 = sbr.rel (0) target = $region65
    $region64: #{tpu_custom_call.1} parent=1 // pred_region
      %706 = vsyncadd [#allocation4], 0
      %s708 = sshll.u32 [#allocation13], 4
      %s709 = int_to_ptr.vmem [resolvable:$true] %s708
      %s710 = sshll.u32 %s9, 4
      %s711 = int_to_ptr.hbm [resolvable:$true] %s710
      %713 = dma.vmem_to_hbm [thread:$0]  %s709, 32, %s711, [#allocation4]
    $region65: #{tpu_custom_call.1} parent=1 // pred_fallthru
      _
    // Predicated region
    $region66: #{tpu_custom_call.1} parent=1 // pred_check
      _
    $region67: #{tpu_custom_call.1} parent=1 // pred_check_branch
      %715 = sbr.rel (0) target = $region69
    $region68: #{tpu_custom_call.1} parent=1 // pred_region
      %717 = dma.done [#allocation4], 32
    $region69: #{tpu_custom_call.1} parent=1 // pred_fallthru
      _
    %718 = vsyncpa [#allocation3], 1
    %719 = vsyncpa [#allocation6], 1
    %720 = vsyncpa [#allocation9], 1
    %721 = vsyncpa [#allocation12], 1
    %722 = vsyncpa [#allocation4], 1

</llo_original>
